<compile_context>
chip_gen: v7x
topology: tpu7x:2x2x1
jax: 0.10.0
libtpu: 0.0.40
codegen_flags: <defaults>
</compile_context>

<pallas_src>
import jax
import jax.numpy as jnp
from jax import lax
from jax.experimental import pallas as pl
from jax.experimental.pallas import tpu as pltpu

# Scoped VMEM budget.  Tiny for the demo shapes; re-derive (and halve the
# tiles) when targeting v7x's 64 MiB physical VMEM with large sequences.
_VMEM_LIMIT_BYTES = 32 * 1024 * 1024


def _weight_spec(shape, index_map):
    """BlockSpec for a constant (grid-invariant) weight: single-buffered."""
    buffered = getattr(pl, "Buffered", None)
    if buffered is not None:
        try:
            return pl.BlockSpec(shape, index_map, pipeline_mode=buffered(1))
        except TypeError:
            pass  # older API without pipeline_mode — fall back to default
    return pl.BlockSpec(shape, index_map)


def _pick_tile(n, cap, mult=16):
    """Largest divisor of n that is <= cap and a multiple of `mult` (or n)."""
    if n <= cap:
        return n
    t = (cap // mult) * mult
    while t >= mult:
        if n % t == 0:
            return t
        t -= mult
    return n


# --------------------------------------------------------------------------
# Kernel 1: project K and V once per key row (bf16 operands, f32 accumulate).
# --------------------------------------------------------------------------
def _kv_proj_kernel(k_ref, v_ref, wk_ref, wv_ref, kp_ref, vp_ref):
    k = k_ref[0].astype(jnp.bfloat16)                       # (Tk, Ks)
    v = v_ref[0].astype(jnp.bfloat16)                       # (Tk, Vs)
    kp_ref[0] = jnp.dot(k, wk_ref[...],
                        preferred_element_type=jnp.float32).astype(kp_ref.dtype)
    vp_ref[0] = jnp.dot(v, wv_ref[...],
                        preferred_element_type=jnp.float32).astype(vp_ref.dtype)


# --------------------------------------------------------------------------
# Kernel 2: Q projection + flash-style attention + output projection.
# grid = (batch, query tiles, key tiles); key-tile axis is "arbitrary".
# --------------------------------------------------------------------------
def _make_attn_kernel(num_heads, head_dim, inv_scaling):
    def kernel(q_ref, kp_ref, vp_ref, wq_ref, wo_ref, out_ref,
               qproj_sc, m_sc, l_sc, acc_sc):
        ki = pl.program_id(2)

        @pl.when(ki == 0)
        def _init():
            # Project the resident Q tile once per (batch, query-tile) and
            # fold the 1/sqrt(emb_size) scale into it.
            q = q_ref[0].astype(jnp.bfloat16)                          # (Tq, Qs)
            qp = jnp.dot(q, wq_ref[...], preferred_element_type=jnp.float32)
            qproj_sc[...] = (qp * inv_scaling).astype(jnp.bfloat16)    # (Tq, E)
            m_sc[...] = jnp.full(m_sc.shape, -jnp.inf, m_sc.dtype)
            l_sc[...] = jnp.zeros(l_sc.shape, l_sc.dtype)
            acc_sc[...] = jnp.zeros(acc_sc.shape, acc_sc.dtype)

        k = kp_ref[0]                                                  # (Tk, E) bf16
        v = vp_ref[0]                                                  # (Tk, E) bf16

        for h in range(num_heads):                 # static unroll over heads
            lo = h * head_dim
            qh = qproj_sc[:, lo:lo + head_dim]                         # (Tq, D) bf16
            kh = k[:, lo:lo + head_dim]                                # (Tk, D) bf16
            vh = v[:, lo:lo + head_dim]                                # (Tk, D) bf16

            # scores[q, k] = qh[q, :] . kh[k, :]   (already pre-scaled via Q)
            s = lax.dot_general(qh, kh, (((1,), (1,)), ((), ())),
                                preferred_element_type=jnp.float32)    # (Tq, Tk)

            m_prev = m_sc[h]                                           # (Tq, 1)
            m_new = jnp.maximum(m_prev, jnp.max(s, axis=-1, keepdims=True))
            alpha = jnp.exp(m_prev - m_new)
            p = jnp.exp(s - m_new)                                     # (Tq, Tk)
            l_sc[h] = alpha * l_sc[h] + jnp.sum(p, axis=-1, keepdims=True)
            pv = jnp.dot(p.astype(jnp.bfloat16), vh,
                         preferred_element_type=jnp.float32)           # (Tq, D)
            acc_sc[:, lo:lo + head_dim] = (
                alpha * acc_sc[:, lo:lo + head_dim] + pv)
            m_sc[h] = m_new

        @pl.when(ki == pl.num_programs(2) - 1)
        def _finalize():
            for h in range(num_heads):
                lo = h * head_dim
                inv_l = pl.reciprocal(l_sc[h], approx=True)            # (Tq, 1)
                acc_sc[:, lo:lo + head_dim] = acc_sc[:, lo:lo + head_dim] * inv_l
            ctx = acc_sc[...].astype(jnp.bfloat16)                     # (Tq, E)
            out = jnp.dot(ctx, wo_ref[...], preferred_element_type=jnp.float32)
            out_ref[0] = out.astype(out_ref.dtype)

    return kernel


def multi_head_self_attention(query, key, value, wq, wk, wv, wo, *,
                              num_heads, emb_size, tile_q=None, tile_k=None):
    """query: (B, Nq, Qs), key: (B, Nk, Ks), value: (B, Nk, Vs).
    wq/wk/wv/wo are pre-transposed nn.Linear weights, shaped (in, out)."""
    B, Nq, Qs = query.shape
    Bk, Nk, Ks = key.shape
    Bv, Nv, Vs = value.shape
    assert B == Bk == Bv and Nk == Nv
    E = emb_size
    assert E % num_heads == 0
    head_dim = E // num_heads
    inv_scaling = 1.0 / (float(E) ** 0.5)        # module divides by sqrt(emb_size)

    # Tile sizing: cap query tiles (~per-step overhead vs VMEM) and keep
    # bf16-friendly multiples of 16.  Halve these defaults when tuning v7x.
    if tile_q is None:
        tile_q = _pick_tile(Nq, 256)
    if tile_k is None:
        tile_k = _pick_tile(Nk, 512)
    # v7x has 2 TensorCores sharded over "parallel" axes: ensure >= 2 steps.
    if B * (Nq // tile_q) < 2 and Nq % 2 == 0 and (Nq // 2) % 16 == 0:
        tile_q = Nq // 2
    assert Nq % tile_q == 0 and Nk % tile_k == 0

    # bf16 weights: MXU-peak operands, half the VMEM/HBM bytes.
    wq_b = wq.astype(jnp.bfloat16)
    wk_b = wk.astype(jnp.bfloat16)
    wv_b = wv.astype(jnp.bfloat16)
    wo_b = wo.astype(jnp.bfloat16)

    # ---------------- pass 1: K/V projection (once per key row) -----------
    kv_flops = 2 * B * Nk * (Ks + Vs) * E
    kv_bytes = (4 * B * Nk * (Ks + Vs)            # f32 key/value in
                + 2 * (Ks + Vs) * E               # bf16 weights
                + 2 * 2 * B * Nk * E)             # bf16 projected K/V out
    kproj, vproj = pl.pallas_call(
        _kv_proj_kernel,
        out_shape=(jax.ShapeDtypeStruct((B, Nk, E), jnp.bfloat16),
                   jax.ShapeDtypeStruct((B, Nk, E), jnp.bfloat16)),
        grid_spec=pltpu.PrefetchScalarGridSpec(
            num_scalar_prefetch=0,
            grid=(B, Nk // tile_k),
            in_specs=[
                pl.BlockSpec((1, tile_k, Ks), lambda b, ki: (b, ki, 0)),
                pl.BlockSpec((1, tile_k, Vs), lambda b, ki: (b, ki, 0)),
                _weight_spec((Ks, E), lambda b, ki: (0, 0)),
                _weight_spec((Vs, E), lambda b, ki: (0, 0)),
            ],
            out_specs=[
                pl.BlockSpec((1, tile_k, E), lambda b, ki: (b, ki, 0)),
                pl.BlockSpec((1, tile_k, E), lambda b, ki: (b, ki, 0)),
            ],
        ),
        compiler_params=pltpu.CompilerParams(
            dimension_semantics=("parallel", "parallel"),
            vmem_limit_bytes=_VMEM_LIMIT_BYTES),
        cost_estimate=pl.CostEstimate(
            flops=kv_flops, transcendentals=0, bytes_accessed=kv_bytes),
    )(key, value, wk_b, wv_b)

    # ---------------- pass 2: Q projection + flash attention + Wo ---------
    n_qtiles = Nq // tile_q
    attn_flops = (2 * B * Nq * Qs * E             # Q projection
                  + 4 * B * Nq * Nk * E           # QK^T and PV
                  + 2 * B * Nq * E * E)           # output projection
    attn_transc = B * num_heads * Nq * Nk
    attn_bytes = (4 * B * Nq * Qs                                # f32 query
                  + 2 * 2 * B * Nk * E * max(1, n_qtiles)        # bf16 K/V streamed per q-tile
                  + 2 * (Qs * E + E * E)                         # bf16 weights
                  + 4 * B * Nq * E)                              # f32 output

    kernel = _make_attn_kernel(num_heads, head_dim, inv_scaling)
    return pl.pallas_call(
        kernel,
        out_shape=jax.ShapeDtypeStruct((B, Nq, E), query.dtype),
        grid_spec=pltpu.PrefetchScalarGridSpec(
            num_scalar_prefetch=0,
            grid=(B, n_qtiles, Nk // tile_k),
            in_specs=[
                pl.BlockSpec((1, tile_q, Qs), lambda b, qi, ki: (b, qi, 0)),
                pl.BlockSpec((1, tile_k, E), lambda b, qi, ki: (b, ki, 0)),
                pl.BlockSpec((1, tile_k, E), lambda b, qi, ki: (b, ki, 0)),
                _weight_spec((Qs, E), lambda b, qi, ki: (0, 0)),
                _weight_spec((E, E), lambda b, qi, ki: (0, 0)),
            ],
            out_specs=pl.BlockSpec((1, tile_q, E), lambda b, qi, ki: (b, qi, 0)),
            scratch_shapes=[
                pltpu.VMEM((tile_q, E), jnp.bfloat16),             # cached Q proj
                pltpu.VMEM((num_heads, tile_q, 1), jnp.float32),   # running max m
                pltpu.VMEM((num_heads, tile_q, 1), jnp.float32),   # running sum l
                pltpu.VMEM((tile_q, E), jnp.float32),              # ctx accumulator
            ],
        ),
        compiler_params=pltpu.CompilerParams(
            dimension_semantics=("parallel", "parallel", "arbitrary"),
            vmem_limit_bytes=_VMEM_LIMIT_BYTES),
        cost_estimate=pl.CostEstimate(
            flops=attn_flops, transcendentals=attn_transc,
            bytes_accessed=attn_bytes),
    )(query, kproj, vproj, wq_b, wo_b)


def mhsa_ref(query, key, value, wq, wk, wv, wo, num_heads, emb_size):
    """Pure-JAX f32 reference mirroring the PyTorch forward (inference path)."""
    hp = jax.lax.Precision.HIGHEST
    B, Nq, _ = query.shape
    H = num_heads
    D = emb_size // H
    scaling = float(emb_size) ** 0.5
    Q = jnp.einsum('bnq,qe->bne', query, wq, precision=hp)
    K = jnp.einsum('bnk,ke->bne', key, wk, precision=hp)
    V = jnp.einsum('bnv,ve->bne', value, wv, precision=hp)
    Q = Q.reshape(B, Nq, H, D).transpose(0, 2, 1, 3)          # b h n d
    K = K.reshape(B, -1, H, D).transpose(0, 2, 1, 3)
    V = V.reshape(B, -1, H, D).transpose(0, 2, 1, 3)
    energy = jnp.einsum('bhqd,bhkd->bhqk', Q, K, precision=hp)
    att = jax.nn.softmax(energy / scaling, axis=-1)
    ctx = jnp.einsum('bhqk,bhkd->bhqd', att, V, precision=hp)
    ctx = ctx.transpose(0, 2, 1, 3).reshape(B, Nq, emb_size)  # b n (h d)
    return jnp.einsum('bne,ef->bnf', ctx, wo, precision=hp)


if __name__ == "__main__":
    # Small, TPU-friendly shapes: 2 heads of head_dim=128 (lane-aligned);
    # tile_q=tile_k=16 < N=32 so the flash K-tile loop and query tiling are
    # both exercised with multiple grid steps.
    B, N = 2, 32
    query_size = key_size = value_size = 64
    emb_size, num_heads = 256, 2

    root = jax.random.PRNGKey(0)
    ks = jax.random.split(root, 7)
    query = jax.random.normal(ks[0], (B, N, query_size), jnp.float32)
    key_in = jax.random.normal(ks[1], (B, N, key_size), jnp.float32)
    value_in = jax.random.normal(ks[2], (B, N, value_size), jnp.float32)
    # nn.Linear weights, stored pre-transposed as (in, out) for lane-dense matmuls.
    wq = jax.random.normal(ks[3], (query_size, emb_size), jnp.float32) * 0.05
    wk = jax.random.normal(ks[4], (key_size, emb_size), jnp.float32) * 0.05
    wv = jax.random.normal(ks[5], (value_size, emb_size), jnp.float32) * 0.05
    wo = jax.random.normal(ks[6], (emb_size, emb_size), jnp.float32) * 0.05

    out = multi_head_self_attention(
        query, key_in, value_in, wq, wk, wv, wo,
        num_heads=num_heads, emb_size=emb_size, tile_q=16, tile_k=16)
    out = jax.block_until_ready(out)

    ref = mhsa_ref(query, key_in, value_in, wq, wk, wv, wo, num_heads, emb_size)
    assert out.shape == (B, N, emb_size)
    max_err = float(jnp.max(jnp.abs(out - ref)))
    # bf16 MXU operands with f32 accumulation: loose-but-meaningful tolerance.
    assert max_err < 2e-2, f"mismatch vs reference: max abs err {max_err}"

    print("KERNEL_OK")
</pallas_src>

<mosaic_0001>
module attributes {stable_mosaic.version = 11 : i64} {
  func.func @_kv_proj_kernel(%arg0: i32, %arg1: i32, %arg2: memref<1x16x64xf32, #tpu.memory_space<vmem>>, %arg3: memref<1x16x64xf32, #tpu.memory_space<vmem>>, %arg4: memref<64x256xbf16, #tpu.memory_space<vmem>>, %arg5: memref<64x256xbf16, #tpu.memory_space<vmem>>, %arg6: memref<1x16x256xbf16, #tpu.memory_space<vmem>>, %arg7: memref<1x16x256xbf16, #tpu.memory_space<vmem>>) attributes {dimension_semantics = [#tpu.dimension_semantics<parallel>, #tpu.dimension_semantics<parallel>], iteration_bounds = array<i64: 2, 2>, scalar_prefetch = 0 : i64, scratch_operands = 0 : i64, tpu.core_type = #tpu.core_type<tc>, window_params = [{transform_indices = @transform_0, window_bounds = array<i64: 1, 16, 64>}, {transform_indices = @transform_1, window_bounds = array<i64: 1, 16, 64>}, {pipeline_mode = #tpu.pipeline_mode<synchronous>, transform_indices = @transform_2, window_bounds = array<i64: 64, 256>}, {pipeline_mode = #tpu.pipeline_mode<synchronous>, transform_indices = @transform_3, window_bounds = array<i64: 64, 256>}, {transform_indices = @transform_4, window_bounds = array<i64: 1, 16, 256>}, {transform_indices = @transform_5, window_bounds = array<i64: 1, 16, 256>}]} {
    %c0 = arith.constant 0 : index
    %c0_0 = arith.constant 0 : index
    %c0_1 = arith.constant 0 : index
    %0 = vector.load %arg2[%c0, %c0_0, %c0_1] : memref<1x16x64xf32, #tpu.memory_space<vmem>>, vector<1x16x64xf32>
    %1 = vector.shape_cast %0 : vector<1x16x64xf32> to vector<16x64xf32>
    %2 = arith.truncf %1 : vector<16x64xf32> to vector<16x64xbf16>
    %c0_2 = arith.constant 0 : index
    %c0_3 = arith.constant 0 : index
    %c0_4 = arith.constant 0 : index
    %3 = vector.load %arg3[%c0_2, %c0_3, %c0_4] : memref<1x16x64xf32, #tpu.memory_space<vmem>>, vector<1x16x64xf32>
    %4 = vector.shape_cast %3 : vector<1x16x64xf32> to vector<16x64xf32>
    %5 = arith.truncf %4 : vector<16x64xf32> to vector<16x64xbf16>
    %c0_5 = arith.constant 0 : index
    %c0_6 = arith.constant 0 : index
    %6 = vector.load %arg4[%c0_5, %c0_6] : memref<64x256xbf16, #tpu.memory_space<vmem>>, vector<64x256xbf16>
    %cst = arith.constant dense<0.000000e+00> : vector<16x256xf32>
    %7 = tpu.matmul %2, %6, %cst {dimension_numbers = #tpu.dot_dimension_numbers<[1], [0], [0], [1], [0, 0, 1, 1], [], []>} : vector<16x64xbf16>, vector<64x256xbf16>, vector<16x256xf32> -> vector<16x256xf32>
    %8 = arith.truncf %7 : vector<16x256xf32> to vector<16x256xbf16>
    %c0_7 = arith.constant 0 : index
    %c0_8 = arith.constant 0 : index
    %c0_9 = arith.constant 0 : index
    %9 = vector.load %arg6[%c0_7, %c0_8, %c0_9] : memref<1x16x256xbf16, #tpu.memory_space<vmem>>, vector<1x16x256xbf16>
    %10 = vector.shape_cast %9 : vector<1x16x256xbf16> to vector<16x256xbf16>
    %11 = vector.shape_cast %8 : vector<16x256xbf16> to vector<1x16x256xbf16>
    tpu.vector_store %arg6[%c0_7, %c0_8, %c0_9], %11 {strides = array<i32>} : memref<1x16x256xbf16, #tpu.memory_space<vmem>>, vector<1x16x256xbf16>,
    %c0_10 = arith.constant 0 : index
    %c0_11 = arith.constant 0 : index
    %12 = vector.load %arg5[%c0_10, %c0_11] : memref<64x256xbf16, #tpu.memory_space<vmem>>, vector<64x256xbf16>
    %cst_12 = arith.constant dense<0.000000e+00> : vector<16x256xf32>
    %13 = tpu.matmul %5, %12, %cst_12 {dimension_numbers = #tpu.dot_dimension_numbers<[1], [0], [0], [1], [0, 0, 1, 1], [], []>} : vector<16x64xbf16>, vector<64x256xbf16>, vector<16x256xf32> -> vector<16x256xf32>
    %14 = arith.truncf %13 : vector<16x256xf32> to vector<16x256xbf16>
    %c0_13 = arith.constant 0 : index
    %c0_14 = arith.constant 0 : index
    %c0_15 = arith.constant 0 : index
    %15 = vector.load %arg7[%c0_13, %c0_14, %c0_15] : memref<1x16x256xbf16, #tpu.memory_space<vmem>>, vector<1x16x256xbf16>
    %16 = vector.shape_cast %15 : vector<1x16x256xbf16> to vector<16x256xbf16>
    %17 = vector.shape_cast %14 : vector<16x256xbf16> to vector<1x16x256xbf16>
    tpu.vector_store %arg7[%c0_13, %c0_14, %c0_15], %17 {strides = array<i32>} : memref<1x16x256xbf16, #tpu.memory_space<vmem>>, vector<1x16x256xbf16>,
    return
  }
  func.func @transform_0(%arg0: i32, %arg1: i32) -> (i32, i32, i32) {
    %c0_i32 = arith.constant 0 : i32
    %c0_i32_0 = arith.constant 0 : i32
    return %arg0, %arg1, %c0_i32 : i32, i32, i32
  }
  func.func @transform_1(%arg0: i32, %arg1: i32) -> (i32, i32, i32) {
    %c0_i32 = arith.constant 0 : i32
    %c0_i32_0 = arith.constant 0 : i32
    return %arg0, %arg1, %c0_i32 : i32, i32, i32
  }
  func.func @transform_2(%arg0: i32, %arg1: i32) -> (i32, i32) {
    %c0_i32 = arith.constant 0 : i32
    %c0_i32_0 = arith.constant 0 : i32
    %c0_i32_1 = arith.constant 0 : i32
    return %c0_i32, %c0_i32_0 : i32, i32
  }
  func.func @transform_3(%arg0: i32, %arg1: i32) -> (i32, i32) {
    %c0_i32 = arith.constant 0 : i32
    %c0_i32_0 = arith.constant 0 : i32
    %c0_i32_1 = arith.constant 0 : i32
    return %c0_i32, %c0_i32_0 : i32, i32
  }
  func.func @transform_4(%arg0: i32, %arg1: i32) -> (i32, i32, i32) {
    %c0_i32 = arith.constant 0 : i32
    %c0_i32_0 = arith.constant 0 : i32
    return %arg0, %arg1, %c0_i32 : i32, i32, i32
  }
  func.func @transform_5(%arg0: i32, %arg1: i32) -> (i32, i32, i32) {
    %c0_i32 = arith.constant 0 : i32
    %c0_i32_0 = arith.constant 0 : i32
    return %arg0, %arg1, %c0_i32 : i32, i32, i32
  }
}

</mosaic_0001>

<llo_original>
// kernel: tpu_custom_call.1
$region0: #{tpu_custom_call.1}
  #allocation0 [shape = 'u32[]', space=smem, size = 0x4, offset = 0x4, fixed_abs, tag = 'smem constant byte address 0x4 - core index']
  #allocation1 [shape = 'u32[144,128]{1,0:T(1,128)}', space=vmem, size = 0x12000, scoped, tag = 'internal scratch']
  %s0 = inlined_call_operand.hbm [shape: f32[2,32,64], index: 0, kind: input, shape index: {}]
  %s1 = inlined_call_operand.hbm [shape: f32[2,32,64], index: 1, kind: input, shape index: {}]
  %s2 = inlined_call_operand.hbm [shape: bf16[64,256], index: 2, kind: input, shape index: {}]
  %s3 = inlined_call_operand.hbm [shape: bf16[64,256], index: 3, kind: input, shape index: {}]
  %s4 = inlined_call_operand.hbm [shape: bf16[2,32,256], index: 4, kind: output, shape index: {0}]
  %s5 = inlined_call_operand.hbm [shape: bf16[2,32,256], index: 5, kind: output, shape index: {1}]
  %6 = xla_tuple %s4, %s5
  %s7 = sld [smem:[#allocation0]]
  $region73: #{tpu_custom_call.1} parent=0
    _
  %s9 = ssub.s32 1, %s7
  %s10 = scalar_select 0, %s9, %s7
  $region1: #{tpu_custom_call.1} parent=0
    #allocation2 [shape = 'u8[16384]{0}', space=vmem, size = 0x4000, scoped, tag = 'input window, operand 0']
    #allocation3 [shape = 's32[2]{0}', space=sflag, size = 0x8, scoped, tag = 'scoped memory for tpu_custom_call.1']
    #allocation4 [shape = 's32[2]{0}', space=sflag, size = 0x8, scoped, tag = 'scoped memory for tpu_custom_call.1']
    #allocation5 [shape = 'u8[16384]{0}', space=vmem, size = 0x4000, scoped, tag = 'input window, operand 1']
    #allocation6 [shape = 's32[2]{0}', space=sflag, size = 0x8, scoped, tag = 'scoped memory for tpu_custom_call.1']
    #allocation7 [shape = 'u8[32768]{0}', space=vmem, size = 0x8000, scoped, tag = 'input window, operand 2, single buffered']
    #allocation8 [shape = 'u8[32768]{0}', space=vmem, size = 0x8000, scoped, tag = 'input window, operand 3, single buffered']
    #allocation9 [shape = 's32[1]{0}', space=sflag, size = 0x4, scoped, tag = 'scoped memory for tpu_custom_call.1']
    #allocation10 [shape = 'u8[16384]{0}', space=vmem, size = 0x4000, scoped, tag = 'output window, operand 0']
    #allocation11 [shape = 'u8[16384]{0}', space=vmem, size = 0x4000, scoped, tag = 'output window, operand 1']
    #allocation12 [shape = 's32[2]{0}', space=sflag, size = 0x8, scoped, tag = 'scoped memory for tpu_custom_call.1']
    %11 = vsyncpa [#allocation3], 0
    %s12 = scalar_lea.sflag [#allocation3], 1
    %13 = vsyncpa %s12, 0
    %14 = vsyncpa [#allocation6], 0
    %s15 = scalar_lea.sflag [#allocation6], 1
    %16 = vsyncpa %s15, 0
    %17 = vsyncpa [#allocation9], 0
    %18 = vsyncpa [#allocation4], 0
    %s19 = scalar_lea.sflag [#allocation4], 1
    %20 = vsyncpa %s19, 0
    %21 = vsyncpa [#allocation12], 0
    %s22 = scalar_lea.sflag [#allocation12], 1
    %23 = vsyncpa %s22, 0
    loop: start=0, step=1, limit=6
    $region2: #{tpu_custom_call.1} parent=1 // loop_pre_header
      _
    $region3: #{tpu_custom_call.1} parent=1 // loop_header
      %s25 = sphi 0, %s29
      %p26 = scmp.ge.s32.totalorder %s25, 6
      %s32 = sphi 0, %s44
      %s33 = sphi 0, %s40
      %s34 = sphi 0, %s32
      %s35 = sphi 0, %s33
      %s36 = sphi 0, %s34
      %s37 = sphi 0, %s35
      %s49 = sphi 0, %s51
      %s52 = sphi 0, %s49
      %s53 = sphi 0, %s52
      %s69 = sphi 0, %s53
      %s77 = sphi 0, %s79
      %s80 = sphi 0, %s77
      %s81 = sphi 0, %s80
      %s97 = sphi 0, %s81
      %s101 = sphi 0, %s101
      %s103 = sphi 0, %s101
      %s104 = sphi 0, %s103
      %s118 = sphi 0, %s104
      %s122 = sphi 0, %s122
      %s124 = sphi 0, %s122
      %s125 = sphi 0, %s124
      %s139 = sphi 0, %s125
      %s147 = sphi 0, %s149
      %s150 = sphi 0, %s147
      %s151 = sphi 0, %s150
      %s167 = sphi 0, %s151
      %s175 = sphi 0, %s177
      %s178 = sphi 0, %s175
      %s179 = sphi 0, %s178
      %s195 = sphi 0, %s179
    $region4: #{tpu_custom_call.1} parent=1 // loop_header_branch
      %28 = sbr.rel (%p26) target = $region8
    $region5: #{tpu_custom_call.1} parent=1 // loop_body
      %s30 = ssub.s32 %s25, 1
      %s31 = ssub.s32 %s25, 2
      %s38 = sadd.s32 1, %s33
      %p39 = scmp.ge.s32.totalorder %s38, 2
      %s40 = scalar_select %p39, 0, %s38
      %s41 = sadd.s32 1, %s32
      %s42 = scalar_select %p39, %s41, %s32
      %p43 = scmp.ge.s32.totalorder %s42, 2
      %s44 = scalar_select %p43, 0, %s42
      %s45 = ssub.s32 %s32, %s44
      %s46 = ssub.s32 %s33, %s40
      %s47 = sor.u32 %s45, %s46
      %p48 = scmp.eq.s32.totalorder %s47, 0
      %s50 = sadd.s32 %s49, 1
      %s51 = scalar_select %p48, %s49, %s50
      %p54 = pneg %p48
      %p55 = scmp.eq.s32.totalorder %s25, 3
      %p56 = por %p54, %p55
      %p57 = scmp.ne.s32.totalorder %s49, %s52
      %p58 = scmp.eq.s32.totalorder %s25, 0
      %p59 = por %p57, %p58
      %p60 = scmp.ne.s32.totalorder %s49, %s52
      %p61 = scmp.eq.s32.totalorder %s30, 3
      %p62 = por %p60, %p61
      %p63 = scmp.ne.s32.totalorder %s52, %s53
      %p64 = scmp.eq.s32.totalorder %s30, 0
      %p65 = por %p63, %p64
      %p66 = scmp.ne.s32.totalorder %s52, %s53
      %p67 = scmp.eq.s32.totalorder %s31, 3
      %p68 = por %p66, %p67
      %p70 = scmp.ne.s32.totalorder %s53, %s69
      %p71 = scmp.eq.s32.totalorder %s31, 0
      %p72 = por %p70, %p71
      %s73 = ssub.s32 %s32, %s44
      %s74 = ssub.s32 %s33, %s40
      %s75 = sor.u32 %s73, %s74
      %p76 = scmp.eq.s32.totalorder %s75, 0
      %s78 = sadd.s32 %s77, 1
      %s79 = scalar_select %p76, %s77, %s78
      %p82 = pneg %p76
      %p83 = scmp.eq.s32.totalorder %s25, 3
      %p84 = por %p82, %p83
      %p85 = scmp.ne.s32.totalorder %s77, %s80
      %p86 = scmp.eq.s32.totalorder %s25, 0
      %p87 = por %p85, %p86
      %p88 = scmp.ne.s32.totalorder %s77, %s80
      %p89 = scmp.eq.s32.totalorder %s30, 3
      %p90 = por %p88, %p89
      %p91 = scmp.ne.s32.totalorder %s80, %s81
      %p92 = scmp.eq.s32.totalorder %s30, 0
      %p93 = por %p91, %p92
      %p94 = scmp.ne.s32.totalorder %s80, %s81
      %p95 = scmp.eq.s32.totalorder %s31, 3
      %p96 = por %p94, %p95
      %p98 = scmp.ne.s32.totalorder %s81, %s97
      %p99 = scmp.eq.s32.totalorder %s31, 0
      %p100 = por %p98, %p99
      %s102 = sadd.s32 %s101, 1
      %p105 = scmp.eq.s32.totalorder %s25, 3
      %p106 = scmp.ne.s32.totalorder %s101, %s103
      %p107 = scmp.eq.s32.totalorder %s25, 0
      %p108 = por %p106, %p107
      %p109 = scmp.ne.s32.totalorder %s101, %s103
      %p110 = scmp.eq.s32.totalorder %s30, 3
      %p111 = por %p109, %p110
      %p112 = scmp.ne.s32.totalorder %s103, %s104
      %p113 = scmp.eq.s32.totalorder %s30, 0
      %p114 = por %p112, %p113
      %p115 = scmp.ne.s32.totalorder %s103, %s104
      %p116 = scmp.eq.s32.totalorder %s31, 3
      %p117 = por %p115, %p116
      %p119 = scmp.ne.s32.totalorder %s104, %s118
      %p120 = scmp.eq.s32.totalorder %s31, 0
      %p121 = por %p119, %p120
      %s123 = sadd.s32 %s122, 1
      %p126 = scmp.eq.s32.totalorder %s25, 3
      %p127 = scmp.ne.s32.totalorder %s122, %s124
      %p128 = scmp.eq.s32.totalorder %s25, 0
      %p129 = por %p127, %p128
      %p130 = scmp.ne.s32.totalorder %s122, %s124
      %p131 = scmp.eq.s32.totalorder %s30, 3
      %p132 = por %p130, %p131
      %p133 = scmp.ne.s32.totalorder %s124, %s125
      %p134 = scmp.eq.s32.totalorder %s30, 0
      %p135 = por %p133, %p134
      %p136 = scmp.ne.s32.totalorder %s124, %s125
      %p137 = scmp.eq.s32.totalorder %s31, 3
      %p138 = por %p136, %p137
      %p140 = scmp.ne.s32.totalorder %s125, %s139
      %p141 = scmp.eq.s32.totalorder %s31, 0
      %p142 = por %p140, %p141
      %s143 = ssub.s32 %s32, %s44
      %s144 = ssub.s32 %s33, %s40
      %s145 = sor.u32 %s143, %s144
      %p146 = scmp.eq.s32.totalorder %s145, 0
      %s148 = sadd.s32 %s147, 1
      %s149 = scalar_select %p146, %s147, %s148
      %p152 = pneg %p146
      %p153 = scmp.eq.s32.totalorder %s25, 3
      %p154 = por %p152, %p153
      %p155 = scmp.ne.s32.totalorder %s147, %s150
      %p156 = scmp.eq.s32.totalorder %s25, 0
      %p157 = por %p155, %p156
      %p158 = scmp.ne.s32.totalorder %s147, %s150
      %p159 = scmp.eq.s32.totalorder %s30, 3
      %p160 = por %p158, %p159
      %p161 = scmp.ne.s32.totalorder %s150, %s151
      %p162 = scmp.eq.s32.totalorder %s30, 0
      %p163 = por %p161, %p162
      %p164 = scmp.ne.s32.totalorder %s150, %s151
      %p165 = scmp.eq.s32.totalorder %s31, 3
      %p166 = por %p164, %p165
      %p168 = scmp.ne.s32.totalorder %s151, %s167
      %p169 = scmp.eq.s32.totalorder %s31, 0
      %p170 = por %p168, %p169
      %s171 = ssub.s32 %s32, %s44
      %s172 = ssub.s32 %s33, %s40
      %s173 = sor.u32 %s171, %s172
      %p174 = scmp.eq.s32.totalorder %s173, 0
      %s176 = sadd.s32 %s175, 1
      %s177 = scalar_select %p174, %s175, %s176
      %p180 = pneg %p174
      %p181 = scmp.eq.s32.totalorder %s25, 3
      %p182 = por %p180, %p181
      %p183 = scmp.ne.s32.totalorder %s175, %s178
      %p184 = scmp.eq.s32.totalorder %s25, 0
      %p185 = por %p183, %p184
      %p186 = scmp.ne.s32.totalorder %s175, %s178
      %p187 = scmp.eq.s32.totalorder %s30, 3
      %p188 = por %p186, %p187
      %p189 = scmp.ne.s32.totalorder %s178, %s179
      %p190 = scmp.eq.s32.totalorder %s30, 0
      %p191 = por %p189, %p190
      %p192 = scmp.ne.s32.totalorder %s178, %s179
      %p193 = scmp.eq.s32.totalorder %s31, 3
      %p194 = por %p192, %p193
      %p196 = scmp.ne.s32.totalorder %s179, %s195
      %p197 = scmp.eq.s32.totalorder %s31, 0
      %p198 = por %p196, %p197
      %p199 = scmp.le.s32.totalorder 1, %s25
      %p200 = scmp.lt.s32.totalorder %s25, 5
      %p201 = pnand %p199, %p200
      %p202 = pneg %p201
      // Predicated region
      $region9: #{tpu_custom_call.1} parent=5 // pred_check
        _
      $region10: #{tpu_custom_call.1} parent=5 // pred_check_branch
        %204 = sbr.rel (%p201) target = $region12
      $region11: #{tpu_custom_call.1} parent=5 // pred_region
        %s205 = ssub.s32 %s25, 1
        // Predicated region
        $region13: #{tpu_custom_call.1} parent=11 // pred_check
          %p206 = pneg %p114
        $region14: #{tpu_custom_call.1} parent=11 // pred_check_branch
          %208 = sbr.rel (%p206) target = $region16
        $region15: #{tpu_custom_call.1} parent=11 // pred_region
          %s210 = ssub.s32 1024, 1024
          %211 = vsyncadd [#allocation6], %s210
          %s212 = sshll.u32 [#allocation7], 4
          %s213 = int_to_ptr.vmem [resolvable:$true] %s212
          %218 = dma.hbm_to_vmem [thread:$0]  %s2, 1024, %s213, [#allocation6], 128, 128, 8
        $region16: #{tpu_custom_call.1} parent=11 // pred_fallthru
          _
        // Predicated region
        $region17: #{tpu_custom_call.1} parent=11 // pred_check
          %p219 = pneg %p135
        $region18: #{tpu_custom_call.1} parent=11 // pred_check_branch
          %221 = sbr.rel (%p219) target = $region20
        $region19: #{tpu_custom_call.1} parent=11 // pred_region
          %s223 = ssub.s32 1024, 1024
          %224 = vsyncadd [#allocation9], %s223
          %s225 = sshll.u32 [#allocation8], 4
          %s226 = int_to_ptr.vmem [resolvable:$true] %s225
          %231 = dma.hbm_to_vmem [thread:$0]  %s3, 1024, %s226, [#allocation9], 128, 128, 8
        $region20: #{tpu_custom_call.1} parent=11 // pred_fallthru
          _
      $region12: #{tpu_custom_call.1} parent=5 // pred_fallthru
        _
      %p232 = scmp.lt.s32.totalorder %s25, 4
      // Predicated region
      $region21: #{tpu_custom_call.1} parent=5 // pred_check
        %p233 = pneg %p232
      $region22: #{tpu_custom_call.1} parent=5 // pred_check_branch
        %235 = sbr.rel (%p233) target = $region24
      $region23: #{tpu_custom_call.1} parent=5 // pred_region
        // Predicated region
        $region25: #{tpu_custom_call.1} parent=23 // pred_check
          %p236 = pneg %p59
        $region26: #{tpu_custom_call.1} parent=23 // pred_check_branch
          %238 = sbr.rel (%p236) target = $region28
        $region27: #{tpu_custom_call.1} parent=23 // pred_region
          %s239 = sand.u32 %s49, 1
          %s240 = scalar_lea.sflag [#allocation3], %s239
          %s241 = sand.u32 %s49, 1
          %s242 = smul.addr %s241, 16
          %s243 = scalar_lea.vmem [#allocation2], %s242
          %s244 = smul.u32 2, %s33
          %s246 = ssub.s32 256, 256
          %247 = vsyncadd %s240, %s246
          %s248 = smul.addr %s32, 4
          %s249 = sadd.s32 %s244, %s248
          %s250 = smul.addr %s249, 128
          %s251 = scalar_lea.hbm %s0, %s250
          %s252 = sshll.u32 %s243, 4
          %s253 = int_to_ptr.vmem [resolvable:$true] %s252
          %258 = dma.hbm_to_vmem [thread:$0]  %s251, 256, %s253, %s240, 128, 128, 8
        $region28: #{tpu_custom_call.1} parent=23 // pred_fallthru
          _
        // Predicated region
        $region29: #{tpu_custom_call.1} parent=23 // pred_check
          %p259 = pneg %p87
        $region30: #{tpu_custom_call.1} parent=23 // pred_check_branch
          %261 = sbr.rel (%p259) target = $region32
        $region31: #{tpu_custom_call.1} parent=23 // pred_region
          %s262 = sand.u32 %s25, 1
          %s263 = scalar_lea.sflag [#allocation6], %s262
          %s264 = sand.u32 %s77, 1
          %s265 = smul.addr %s264, 16
          %s266 = scalar_lea.vmem [#allocation5], %s265
          %s267 = smul.u32 2, %s33
          %s269 = ssub.s32 256, 256
          %270 = vsyncadd %s263, %s269
          %s271 = smul.addr %s32, 4
          %s272 = sadd.s32 %s267, %s271
          %s273 = smul.addr %s272, 128
          %s274 = scalar_lea.hbm %s1, %s273
          %s275 = sshll.u32 %s266, 4
          %s276 = int_to_ptr.vmem [resolvable:$true] %s275
          %281 = dma.hbm_to_vmem [thread:$0]  %s274, 256, %s276, %s263, 128, 128, 8
        $region32: #{tpu_custom_call.1} parent=23 // pred_fallthru
          _
      $region24: #{tpu_custom_call.1} parent=5 // pred_fallthru
        _
      %p282 = scmp.le.s32.totalorder 1, %s25
      %p283 = scmp.lt.s32.totalorder %s25, 5
      %p284 = pnand %p282, %p283
      %p285 = pneg %p284
      // Predicated region
      $region33: #{tpu_custom_call.1} parent=5 // pred_check
        _
      $region34: #{tpu_custom_call.1} parent=5 // pred_check_branch
        %287 = sbr.rel (%p284) target = $region36
      $region35: #{tpu_custom_call.1} parent=5 // pred_region
        %s288 = ssub.s32 %s25, 1
        %s289 = sand.u32 %s52, 1
        %s290 = scalar_lea.sflag [#allocation3], %s289
        %s291 = sand.u32 %s52, 1
        %s292 = smul.addr %s291, 16
        %s293 = scalar_lea.vmem [#allocation2], %s292
        // Predicated region
        $region37: #{tpu_custom_call.1} parent=35 // pred_check
          %p294 = pneg %p65
        $region38: #{tpu_custom_call.1} parent=35 // pred_check_branch
          %296 = sbr.rel (%p294) target = $region40
        $region39: #{tpu_custom_call.1} parent=35 // pred_region
          %297 = dma.done %s290, 256
        $region40: #{tpu_custom_call.1} parent=35 // pred_fallthru
          _
        %s298 = sand.u32 %s30, 1
        %s299 = scalar_lea.sflag [#allocation6], %s298
        %s300 = sand.u32 %s80, 1
        %s301 = smul.addr %s300, 16
        %s302 = scalar_lea.vmem [#allocation5], %s301
        // Predicated region
        $region41: #{tpu_custom_call.1} parent=35 // pred_check
          %p303 = pneg %p93
        $region42: #{tpu_custom_call.1} parent=35 // pred_check_branch
          %305 = sbr.rel (%p303) target = $region44
        $region43: #{tpu_custom_call.1} parent=35 // pred_region
          %306 = dma.done %s299, 256
        $region44: #{tpu_custom_call.1} parent=35 // pred_fallthru
          _
        // Predicated region
        $region45: #{tpu_custom_call.1} parent=35 // pred_check
          %p307 = pneg %p114
        $region46: #{tpu_custom_call.1} parent=35 // pred_check_branch
          %309 = sbr.rel (%p307) target = $region48
        $region47: #{tpu_custom_call.1} parent=35 // pred_region
          %310 = dma.done [#allocation6], 1024
        $region48: #{tpu_custom_call.1} parent=35 // pred_fallthru
          _
        // Predicated region
        $region49: #{tpu_custom_call.1} parent=35 // pred_check
          %p311 = pneg %p135
        $region50: #{tpu_custom_call.1} parent=35 // pred_check_branch
          %313 = sbr.rel (%p311) target = $region52
        $region51: #{tpu_custom_call.1} parent=35 // pred_region
          %314 = dma.done [#allocation9], 1024
        $region52: #{tpu_custom_call.1} parent=35 // pred_fallthru
          _
        %s315 = sand.u32 %s52, 1
        %s316 = scalar_lea.sflag [#allocation3], %s315
        %s317 = sand.u32 %s52, 1
        %s318 = smul.addr %s317, 16
        %s319 = scalar_lea.vmem [#allocation2], %s318
        %p320 = pneg %p65
        %p321 = pneg %p62
        %s322 = sand.u32 %s30, 1
        %s323 = scalar_lea.sflag [#allocation6], %s322
        %s324 = sand.u32 %s80, 1
        %s325 = smul.addr %s324, 16
        %s326 = scalar_lea.vmem [#allocation5], %s325
        %p327 = pneg %p93
        %p328 = pneg %p90
        %p329 = pneg %p114
        %p330 = pneg %p111
        %p331 = pneg %p135
        %p332 = pneg %p132
        %p333 = pneg %p163
        %p334 = pneg %p160
        %s335 = sand.u32 %s150, 1
        %s336 = scalar_lea.sflag [#allocation4], %s335
        %s337 = sand.u32 %s150, 1
        %s338 = smul.addr %s337, 16
        %s339 = scalar_lea.vmem [#allocation10], %s338
        %p340 = pneg %p191
        %p341 = pneg %p188
        %s342 = sand.u32 %s178, 1
        %s343 = scalar_lea.sflag [#allocation12], %s342
        %s344 = sand.u32 %s178, 1
        %s345 = smul.addr %s344, 16
        %s346 = scalar_lea.vmem [#allocation11], %s345
        %s347 = smul.u32 2, %s35
        %s348 = smul.u32 2, %s35
        %s349 = smul.u32 2, %s35
        %s350 = smul.u32 2, %s35
        %v352 = vld [vmem:[%s293] sm:$0xff]
        %v353 = vld [vmem:[%s293 + $0x8] sm:$0xff]
        %v354 = vpack.c.bf16 %v353, %v352
        %v355 = vld [vmem:[%s302] sm:$0xff]
        %v356 = vld [vmem:[%s302 + $0x8] sm:$0xff]
        %v357 = vpack.c.bf16 %v356, %v355
        %v358 = vld [vmem:[#allocation7] sm:$0xff]
        %v359 = vld [vmem:[#allocation7 + $0x8] sm:$0xff]
        %v360 = vld [vmem:[#allocation7 + $0x10] sm:$0xff]
        %v361 = vld [vmem:[#allocation7 + $0x18] sm:$0xff]
        %v362 = vld [vmem:[#allocation7 + $0x20] sm:$0xff]
        %v363 = vld [vmem:[#allocation7 + $0x28] sm:$0xff]
        %v364 = vld [vmem:[#allocation7 + $0x30] sm:$0xff]
        %v365 = vld [vmem:[#allocation7 + $0x38] sm:$0xff]
        %v374 = vunpack.c.l.b16 %v358
        %v375 = vunpack.c.h.b16 %v358
        %v376 = vunpack.c.l.b16 %v359
        %v377 = vunpack.c.h.b16 %v359
        %v378 = vunpack.c.l.b16 %v360
        %v379 = vunpack.c.h.b16 %v360
        %v380 = vunpack.c.l.b16 %v361
        %v381 = vunpack.c.h.b16 %v361
        %v382 = vunpack.c.l.b16 %v362
        %v383 = vunpack.c.h.b16 %v362
        %v384 = vunpack.c.l.b16 %v363
        %v385 = vunpack.c.h.b16 %v363
        %v386 = vunpack.c.l.b16 %v364
        %v387 = vunpack.c.h.b16 %v364
        %v388 = vunpack.c.l.b16 %v365
        %v389 = vunpack.c.h.b16 %v365
        %v390 = vpack.c.b16 %v376, %v374
        %v391 = vpack.c.b16 %v377, %v375
        %v392 = vpack.c.b16 %v380, %v378
        %v393 = vpack.c.b16 %v381, %v379
        %v394 = vpack.c.b16 %v384, %v382
        %v395 = vpack.c.b16 %v385, %v383
        %v396 = vpack.c.b16 %v388, %v386
        %v397 = vpack.c.b16 %v389, %v387
        %vm406 = vcmask 523264
        %v408 = vsel %vm406, %v354, 0
        %410 = vmatprep.subr.bf16.mxu0 %v391
        %411 = vmatpush1.bf16.msra.mxu0 %v390
        %412 = vmatprep.subr.bf16.mxu0 %v393
        %413 = vmatpush1.bf16.msra.mxu0 %v392
        %414 = vmatprep.subr.bf16.mxu0 %v395
        %415 = vmatpush1.bf16.msra.mxu0 %v394
        %416 = vmatprep.subr.bf16.mxu0 %v397
        %417 = vmatpush1.bf16.msra.mxu0 %v396
        %418 = vmatprep.subr.bf16.mxu0 0
        %419 = vmatpush1.bf16.msra.mxu0 0
        %420 = vmatprep.subr.bf16.mxu0 0
        %421 = vmatpush1.bf16.msra.mxu0 0
        %422 = vmatprep.subr.bf16.mxu0 0
        %423 = vmatpush1.bf16.msra.mxu0 0
        %424 = vmatprep.subr.bf16.mxu0 0
        %425 = vmatpush1.bf16.msra.mxu0 0
        %426 = vmatprep.subr.bf16.mxu0 0
        %427 = vmatpush1.bf16.msra.mxu0 0
        %428 = vmatprep.subr.bf16.mxu0 0
        %429 = vmatpush1.bf16.msra.mxu0 0
        %430 = vmatprep.subr.bf16.mxu0 0
        %431 = vmatpush1.bf16.msra.mxu0 0
        %432 = vmatprep.subr.bf16.mxu0 0
        %433 = vmatpush1.bf16.msra.mxu0 0
        %434 = vmatprep.subr.bf16.mxu0 0
        %435 = vmatpush1.bf16.msra.mxu0 0
        %436 = vmatprep.subr.bf16.mxu0 0
        %437 = vmatpush1.bf16.msra.mxu0 0
        %438 = vmatprep.subr.bf16.mxu0 0
        %439 = vmatpush1.bf16.msra.mxu0 0
        %440 = vmatprep.subr.bf16.mxu0 0
        %441 = vmatpush1.bf16.msra.mxu0 0
        %442 = vmatprep.mubr.bf16.mxu0 0
        %443 = vmatmul.mubr.bf16.gmra.mrb[0].mxu0 %v408
        %v444 = vpop.f32.mrb[0].mxu0
        %v445 = vadd.f32 0.0, %v444
        %v446 = vpop.f32.mrb[0].mxu0
        %v447 = vadd.f32 0.0, %v446
        %v448 = vpop.f32.mrb[0].mxu0
        %v449 = vadd.f32 0.0, %v448
        %v450 = vpop.f32.mrb[0].mxu0
        %v451 = vadd.f32 0.0, %v450
        %452 = vdwg.mxu0
        %v453 = vpack.c.bf16 %v449, %v445
        %v454 = vpack.c.bf16 %v451, %v447
        %v457 = vunpack.c.l.b16 %v453
        %v458 = vunpack.c.l.b16 %v454
        %v459 = vunpack.c.h.b16 %v453
        %v460 = vunpack.c.h.b16 %v454
        %v461 = vpack.c.b16 %v458, %v457
        %v462 = vpack.c.b16 %v460, %v459
        %465 = vst [vmem:[%s339] sm:$0xff] %v461
        %466 = vst [vmem:[%s339 + $0x8] sm:$0xff] %v462
        %v467 = vld [vmem:[#allocation8] sm:$0xff]
        %v468 = vld [vmem:[#allocation8 + $0x8] sm:$0xff]
        %v469 = vld [vmem:[#allocation8 + $0x10] sm:$0xff]
        %v470 = vld [vmem:[#allocation8 + $0x18] sm:$0xff]
        %v471 = vld [vmem:[#allocation8 + $0x20] sm:$0xff]
        %v472 = vld [vmem:[#allocation8 + $0x28] sm:$0xff]
        %v473 = vld [vmem:[#allocation8 + $0x30] sm:$0xff]
        %v474 = vld [vmem:[#allocation8 + $0x38] sm:$0xff]
        %v483 = vunpack.c.l.b16 %v467
        %v484 = vunpack.c.h.b16 %v467
        %v485 = vunpack.c.l.b16 %v468
        %v486 = vunpack.c.h.b16 %v468
        %v487 = vunpack.c.l.b16 %v469
        %v488 = vunpack.c.h.b16 %v469
        %v489 = vunpack.c.l.b16 %v470
        %v490 = vunpack.c.h.b16 %v470
        %v491 = vunpack.c.l.b16 %v471
        %v492 = vunpack.c.h.b16 %v471
        %v493 = vunpack.c.l.b16 %v472
        %v494 = vunpack.c.h.b16 %v472
        %v495 = vunpack.c.l.b16 %v473
        %v496 = vunpack.c.h.b16 %v473
        %v497 = vunpack.c.l.b16 %v474
        %v498 = vunpack.c.h.b16 %v474
        %v499 = vpack.c.b16 %v485, %v483
        %v500 = vpack.c.b16 %v486, %v484
        %v501 = vpack.c.b16 %v489, %v487
        %v502 = vpack.c.b16 %v490, %v488
        %v503 = vpack.c.b16 %v493, %v491
        %v504 = vpack.c.b16 %v494, %v492
        %v505 = vpack.c.b16 %v497, %v495
        %v506 = vpack.c.b16 %v498, %v496
        %v516 = vsel %vm406, %v357, 0
        %518 = vmatprep.subr.bf16.mxu0 %v500
        %519 = vmatpush1.bf16.msra.mxu0 %v499
        %520 = vmatprep.subr.bf16.mxu0 %v502
        %521 = vmatpush1.bf16.msra.mxu0 %v501
        %522 = vmatprep.subr.bf16.mxu0 %v504
        %523 = vmatpush1.bf16.msra.mxu0 %v503
        %524 = vmatprep.subr.bf16.mxu0 %v506
        %525 = vmatpush1.bf16.msra.mxu0 %v505
        %526 = vmatprep.subr.bf16.mxu0 0
        %527 = vmatpush1.bf16.msra.mxu0 0
        %528 = vmatprep.subr.bf16.mxu0 0
        %529 = vmatpush1.bf16.msra.mxu0 0
        %530 = vmatprep.subr.bf16.mxu0 0
        %531 = vmatpush1.bf16.msra.mxu0 0
        %532 = vmatprep.subr.bf16.mxu0 0
        %533 = vmatpush1.bf16.msra.mxu0 0
        %534 = vmatprep.subr.bf16.mxu0 0
        %535 = vmatpush1.bf16.msra.mxu0 0
        %536 = vmatprep.subr.bf16.mxu0 0
        %537 = vmatpush1.bf16.msra.mxu0 0
        %538 = vmatprep.subr.bf16.mxu0 0
        %539 = vmatpush1.bf16.msra.mxu0 0
        %540 = vmatprep.subr.bf16.mxu0 0
        %541 = vmatpush1.bf16.msra.mxu0 0
        %542 = vmatprep.subr.bf16.mxu0 0
        %543 = vmatpush1.bf16.msra.mxu0 0
        %544 = vmatprep.subr.bf16.mxu0 0
        %545 = vmatpush1.bf16.msra.mxu0 0
        %546 = vmatprep.subr.bf16.mxu0 0
        %547 = vmatpush1.bf16.msra.mxu0 0
        %548 = vmatprep.subr.bf16.mxu0 0
        %549 = vmatpush1.bf16.msra.mxu0 0
        %550 = vmatprep.mubr.bf16.mxu0 0
        %551 = vmatmul.mubr.bf16.gmra.mrb[0].mxu0 %v516
        %v552 = vpop.f32.mrb[0].mxu0
        %v553 = vadd.f32 0.0, %v552
        %v554 = vpop.f32.mrb[0].mxu0
        %v555 = vadd.f32 0.0, %v554
        %v556 = vpop.f32.mrb[0].mxu0
        %v557 = vadd.f32 0.0, %v556
        %v558 = vpop.f32.mrb[0].mxu0
        %v559 = vadd.f32 0.0, %v558
        %560 = vdwg.mxu0
        %v561 = vpack.c.bf16 %v557, %v553
        %v562 = vpack.c.bf16 %v559, %v555
        %v565 = vunpack.c.l.b16 %v561
        %v566 = vunpack.c.l.b16 %v562
        %v567 = vunpack.c.h.b16 %v561
        %v568 = vunpack.c.h.b16 %v562
        %v569 = vpack.c.b16 %v566, %v565
        %v570 = vpack.c.b16 %v568, %v567
        %573 = vst [vmem:[%s346] sm:$0xff] %v569
        %574 = vst [vmem:[%s346 + $0x8] sm:$0xff] %v570
        %s575 = sand.u32 %s150, 1
        %s576 = scalar_lea.sflag [#allocation4], %s575
        %s577 = sand.u32 %s150, 1
        %s578 = smul.addr %s577, 16
        %s579 = scalar_lea.vmem [#allocation10], %s578
        %s580 = sand.u32 %s178, 1
        %s581 = scalar_lea.sflag [#allocation12], %s580
        %s582 = sand.u32 %s178, 1
        %s583 = smul.addr %s582, 16
        %s584 = scalar_lea.vmem [#allocation11], %s583
        // Predicated region
        $region53: #{tpu_custom_call.1} parent=35 // pred_check
          %p585 = pneg %p160
        $region54: #{tpu_custom_call.1} parent=35 // pred_check_branch
          %587 = sbr.rel (%p585) target = $region56
        $region55: #{tpu_custom_call.1} parent=35 // pred_region
          %s588 = smul.u32 2, %s35
          %s590 = ssub.s32 256, 256
          %591 = vsyncadd %s576, %s590
          %s592 = smul.addr %s588, 2
          %s593 = smul.addr %s34, 8
          %s594 = sadd.s32 %s592, %s593
          %s595 = smul.addr %s594, 64
          %s596 = scalar_lea.hbm %s4, %s595
          %s597 = sshll.u32 %s579, 4
          %s598 = int_to_ptr.vmem [resolvable:$true] %s597
          %603 = dma.vmem_to_hbm [thread:$0]  %s598, 256, %s596, %s576, 128, 128, 8
        $region56: #{tpu_custom_call.1} parent=35 // pred_fallthru
          _
        // Predicated region
        $region57: #{tpu_custom_call.1} parent=35 // pred_check
          %p604 = pneg %p188
        $region58: #{tpu_custom_call.1} parent=35 // pred_check_branch
          %606 = sbr.rel (%p604) target = $region60
        $region59: #{tpu_custom_call.1} parent=35 // pred_region
          %s607 = smul.u32 2, %s35
          %s609 = ssub.s32 256, 256
          %610 = vsyncadd %s581, %s609
          %s611 = smul.addr %s607, 2
          %s612 = smul.addr %s34, 8
          %s613 = sadd.s32 %s611, %s612
          %s614 = smul.addr %s613, 64
          %s615 = scalar_lea.hbm %s5, %s614
          %s616 = sshll.u32 %s584, 4
          %s617 = int_to_ptr.vmem [resolvable:$true] %s616
          %622 = dma.vmem_to_hbm [thread:$0]  %s617, 256, %s615, %s581, 128, 128, 8
        $region60: #{tpu_custom_call.1} parent=35 // pred_fallthru
          _
      $region36: #{tpu_custom_call.1} parent=5 // pred_fallthru
        _
      %p623 = scmp.le.s32.totalorder 2, %s25
      // Predicated region
      $region61: #{tpu_custom_call.1} parent=5 // pred_check
        %p624 = pneg %p623
      $region62: #{tpu_custom_call.1} parent=5 // pred_check_branch
        %626 = sbr.rel (%p624) target = $region64
      $region63: #{tpu_custom_call.1} parent=5 // pred_region
        %s627 = ssub.s32 %s25, 2
        // Predicated region
        $region65: #{tpu_custom_call.1} parent=63 // pred_check
          %p628 = pneg %p166
        $region66: #{tpu_custom_call.1} parent=63 // pred_check_branch
          %630 = sbr.rel (%p628) target = $region68
        $region67: #{tpu_custom_call.1} parent=63 // pred_region
          %s631 = sand.u32 %s151, 1
          %s632 = scalar_lea.sflag [#allocation4], %s631
          %s633 = sand.u32 %s151, 1
          %s634 = smul.addr %s633, 16
          %s635 = scalar_lea.vmem [#allocation10], %s634
          %636 = dma.done %s632, 256
        $region68: #{tpu_custom_call.1} parent=63 // pred_fallthru
          _
        // Predicated region
        $region69: #{tpu_custom_call.1} parent=63 // pred_check
          %p637 = pneg %p194
        $region70: #{tpu_custom_call.1} parent=63 // pred_check_branch
          %639 = sbr.rel (%p637) target = $region72
        $region71: #{tpu_custom_call.1} parent=63 // pred_region
          %s640 = sand.u32 %s179, 1
          %s641 = scalar_lea.sflag [#allocation12], %s640
          %s642 = sand.u32 %s179, 1
          %s643 = smul.addr %s642, 16
          %s644 = scalar_lea.vmem [#allocation11], %s643
          %645 = dma.done %s641, 256
        $region72: #{tpu_custom_call.1} parent=63 // pred_fallthru
          _
      $region64: #{tpu_custom_call.1} parent=5 // pred_fallthru
        _
    $region6: #{tpu_custom_call.1} parent=1 // loop_footer
      %s29 = sadd.s32 1, %s25
    $region7: #{tpu_custom_call.1} parent=1 // loop_footer_branch
      %24 = sbr.rel target = $region3
    $region8: #{tpu_custom_call.1} parent=1 // loop_exit
      _
    %646 = vsyncpa [#allocation3], 1
    %s647 = scalar_lea.sflag [#allocation3], 1
    %648 = vsyncpa %s647, 1
    %649 = vsyncpa [#allocation6], 1
    %s650 = scalar_lea.sflag [#allocation6], 1
    %651 = vsyncpa %s650, 1
    %652 = vsyncpa [#allocation9], 1
    %653 = vsyncpa [#allocation4], 1
    %s654 = scalar_lea.sflag [#allocation4], 1
    %655 = vsyncpa %s654, 1
    %656 = vsyncpa [#allocation12], 1
    %s657 = scalar_lea.sflag [#allocation12], 1
    %658 = vsyncpa %s657, 1

</llo_original>
